<compile_context>
chip_gen: v5e
topology: v5e:2x2
jax: 0.10.0
libtpu: 0.0.40
codegen_flags: <defaults>
</compile_context>

<pallas_src>
import functools

import jax
import jax.numpy as jnp
from jax.experimental import pallas as pl
from jax.experimental.pallas import tpu as pltpu

_EPS = 1e-8          # PyTorch F.cosine_similarity default eps
_NUM_CORES = 2       # leading "parallel" grid axis (used by v7x megacore)


def _cosine_contrastive_kernel(x1_ref, x2_ref, label_ref, out_ref, *,
                               margin, true_b, block_b, tiles_per_core,
                               mask_possible):
    c = pl.program_id(0)
    i = pl.program_id(1)

    # Zero this core's resident partial-sum block on its first inner step.
    @pl.when(i == 0)
    def _():
        out_ref[...] = jnp.zeros_like(out_ref)

    x1 = x1_ref[...].astype(jnp.float32)          # (TB, D)
    x2 = x2_ref[...].astype(jnp.float32)          # (TB, D)
    lab = label_ref[...].astype(jnp.float32)      # (TB, 1)

    # Cosine similarity along dim=1 (keepdims -> stay 2-D / lane layout).
    dot = jnp.sum(x1 * x2, axis=-1, keepdims=True)    # (TB, 1)
    n1 = jnp.sum(x1 * x1, axis=-1, keepdims=True)     # (TB, 1)
    n2 = jnp.sum(x2 * x2, axis=-1, keepdims=True)     # (TB, 1)
    inv1 = jax.lax.rsqrt(jnp.maximum(n1, _EPS * _EPS))   # per-norm eps clamp
    inv2 = jax.lax.rsqrt(jnp.maximum(n2, _EPS * _EPS))   # (matches PyTorch)
    cos = dot * inv1 * inv2                              # (TB, 1)

    # (1-label)*(1-cos)^2/4 + label*(cos*(cos<margin))^2, lerp form.
    omc = 1.0 - cos
    neg = 0.25 * (omc * omc)
    pos = jnp.where(cos < margin, cos * cos, 0.0)
    per_example = neg + lab * (pos - neg)               # (TB, 1)

    if mask_possible:
        # Only the block straddling B (or a phantom block clamped onto the
        # last real block) needs the lane-sparse row mask.
        row_start = (c * tiles_per_core + i) * block_b   # runtime scalar
        needs_mask = row_start + block_b > true_b

        @pl.when(needs_mask)
        def _():
            rows = row_start + jax.lax.broadcasted_iota(
                jnp.int32, per_example.shape, 0)
            masked = jnp.where(rows < true_b, per_example, 0.0)
            out_ref[...] += jnp.sum(masked)

        @pl.when(jnp.logical_not(needs_mask))
        def _():
            out_ref[...] += jnp.sum(per_example)
    else:
        out_ref[...] += jnp.sum(per_example)


def _round_up(x, m):
    return (x + m - 1) // m * m


def _vmem_limit_bytes():
    """Generation-aware scoped-VMEM request (v5e/v6e: 64 MiB, v7x: 32 MiB)."""
    try:
        cap = int(pltpu.get_tpu_info().vmem_capacity_bytes)
    except Exception:
        cap = 64 * 1024 * 1024   # conservative (assume v7x-sized VMEM)
    return min(cap // 2, 64 * 1024 * 1024)


def _choose_block_b(B, D, itemsize, per_buffer_bytes):
    """Rows per tile so each input tile per pipeline buffer is
    ~per_buffer_bytes (2 inputs x 2 buffers stream concurrently)."""
    tb = per_buffer_bytes // max(D * itemsize, 1)
    tb = max(8, (tb // 8) * 8)
    tb = min(tb, _round_up(B, 8))
    return int(tb)


def cosine_contrastive_loss(output1, output2, label, margin=0.0, block_b=None):
    """output1, output2: (B, D) f32/bf16; label: (B,). Returns scalar f32 loss.

    Pass bf16 embeddings directly if they are produced in bf16 upstream
    (halves HBM traffic); accumulation is always f32 in-kernel.
    """
    B, D = output1.shape
    itemsize = jnp.dtype(output1.dtype).itemsize

    vmem_limit = _vmem_limit_bytes()
    tb = block_b if block_b is not None else _choose_block_b(
        B, D, itemsize, per_buffer_bytes=vmem_limit // 16)

    nblocks = pl.cdiv(B, tb)                       # real blocks in the array
    tiles_per_core = pl.cdiv(nblocks, _NUM_CORES)  # inner (arbitrary) extent
    mask_possible = (B % tb != 0) or (_NUM_CORES * tiles_per_core != nblocks)

    label2d = label.reshape(B, 1).astype(jnp.float32)

    def in_map(c, i):
        # Clamp phantom block indices onto the last real block; the in-kernel
        # row mask zeroes their contribution.
        return (jnp.minimum(c * tiles_per_core + i, nblocks - 1), 0)

    kernel = functools.partial(
        _cosine_contrastive_kernel,
        margin=float(margin), true_b=int(B), block_b=int(tb),
        tiles_per_core=int(tiles_per_core), mask_possible=bool(mask_possible))

    # One (8,128) f32 partial-sum block per core (lane/sublane aligned).
    out = pl.pallas_call(
        kernel,
        out_shape=jax.ShapeDtypeStruct((_NUM_CORES * 8, 128), jnp.float32),
        grid=(_NUM_CORES, tiles_per_core),
        in_specs=[
            pl.BlockSpec((tb, D), in_map),
            pl.BlockSpec((tb, D), in_map),
            pl.BlockSpec((tb, 1), in_map),
        ],
        out_specs=pl.BlockSpec((8, 128), lambda c, i: (c, 0)),
        compiler_params=pltpu.CompilerParams(
            dimension_semantics=("parallel", "arbitrary"),
            vmem_limit_bytes=vmem_limit,
        ),
    )(output1, output2, label2d)

    partials = out.reshape(_NUM_CORES, 8, 128)[:, 0, 0]
    return jnp.sum(partials) / jnp.float32(B)


def _reference(output1, output2, label, margin=0.0):
    # Pure-JAX reference mirroring the PyTorch semantics.
    x1 = output1.astype(jnp.float32)
    x2 = output2.astype(jnp.float32)
    lab = label.astype(jnp.float32)
    dot = jnp.sum(x1 * x2, axis=1)
    n1 = jnp.sqrt(jnp.sum(x1 * x1, axis=1))
    n2 = jnp.sqrt(jnp.sum(x2 * x2, axis=1))
    cos = dot / (jnp.maximum(n1, _EPS) * jnp.maximum(n2, _EPS))
    loss = jnp.mean((1.0 - lab) * jnp.square(1.0 - cos) / 4.0
                    + lab * jnp.square(cos * (cos < margin)))
    return loss


if __name__ == "__main__":
    key = jax.random.PRNGKey(0)
    k1, k2, k3 = jax.random.split(key, 3)

    # Small shapes: batch of sentence-embedding pairs.
    B, D = 8, 32
    output1 = jax.random.normal(k1, (B, D), dtype=jnp.float32)
    output2 = jax.random.normal(k2, (B, D), dtype=jnp.float32)
    label = jax.random.bernoulli(k3, 0.5, (B,)).astype(jnp.float32)

    loss = cosine_contrastive_loss(output1, output2, label, margin=0.0)
    loss = jax.block_until_ready(loss)
    ref = _reference(output1, output2, label, margin=0.0)
    assert jnp.allclose(loss, ref, atol=1e-5, rtol=1e-5), (loss, ref)

    # Ragged batch (B not a multiple of the tile) + forced small tile to
    # exercise the two-core split, block-index clamping and tail masking.
    B2, D2 = 100, 64
    k4, k5, k6 = jax.random.split(jax.random.PRNGKey(1), 3)
    o1 = jax.random.normal(k4, (B2, D2), dtype=jnp.float32)
    o2 = jax.random.normal(k5, (B2, D2), dtype=jnp.float32)
    lab2 = jax.random.bernoulli(k6, 0.5, (B2,)).astype(jnp.float32)
    loss2 = jax.block_until_ready(
        cosine_contrastive_loss(o1, o2, lab2, margin=0.5, block_b=16))
    ref2 = _reference(o1, o2, lab2, margin=0.5)
    assert jnp.allclose(loss2, ref2, atol=1e-5, rtol=1e-5), (loss2, ref2)

    # Auto tile-size path (byte-budgeted blocks) on the ragged batch.
    loss2b = jax.block_until_ready(
        cosine_contrastive_loss(o1, o2, lab2, margin=0.5))
    assert jnp.allclose(loss2b, ref2, atol=1e-5, rtol=1e-5), (loss2b, ref2)

    # bf16 inputs (halved HBM traffic), f32 accumulation in-kernel.
    loss3 = jax.block_until_ready(
        cosine_contrastive_loss(o1.astype(jnp.bfloat16),
                                o2.astype(jnp.bfloat16), lab2, margin=0.5,
                                block_b=16))
    assert jnp.allclose(loss3, ref2, atol=2e-2, rtol=2e-2), (loss3, ref2)

    print("KERNEL_OK")
</pallas_src>

<mosaic_0001>
module attributes {stable_mosaic.version = 11 : i64} {
  func.func @_cosine_contrastive_kernel(%arg0: i32, %arg1: i32, %arg2: memref<8x32xf32, #tpu.memory_space<vmem>>, %arg3: memref<8x32xf32, #tpu.memory_space<vmem>>, %arg4: memref<8x1xf32, #tpu.memory_space<vmem>>, %arg5: memref<8x128xf32, #tpu.memory_space<vmem>>) attributes {dimension_semantics = [#tpu.dimension_semantics<parallel>, #tpu.dimension_semantics<arbitrary>], iteration_bounds = array<i64: 2, 1>, scalar_prefetch = 0 : i64, scratch_operands = 0 : i64, tpu.core_type = #tpu.core_type<tc>, window_params = [{transform_indices = @transform_0, window_bounds = array<i64: 8, 32>}, {transform_indices = @transform_1, window_bounds = array<i64: 8, 32>}, {transform_indices = @transform_2, window_bounds = array<i64: 8, 1>}, {transform_indices = @transform_3, window_bounds = array<i64: 8, 128>}]} {
    %c0_i32 = arith.constant 0 : i32
    %0 = arith.cmpi eq, %arg1, %c0_i32 : i32
    %1 = arith.extui %0 : i1 to i32
    %c0_i32_0 = arith.constant 0 : i32
    %2 = arith.cmpi ne, %1, %c0_i32_0 : i32
    scf.if %2 {
      %cst_18 = arith.constant 0.000000e+00 : f32
      %46 = vector.broadcast %cst_18 : f32 to vector<8x128xf32>
      %c0_19 = arith.constant 0 : index
      %c0_20 = arith.constant 0 : index
      %47 = vector.load %arg5[%c0_19, %c0_20] : memref<8x128xf32, #tpu.memory_space<vmem>>, vector<8x128xf32>
      tpu.vector_store %arg5[%c0_19, %c0_20], %46 {strides = array<i32>} : memref<8x128xf32, #tpu.memory_space<vmem>>, vector<8x128xf32>,
    } else {
    }
    %c0 = arith.constant 0 : index
    %c0_1 = arith.constant 0 : index
    %3 = vector.load %arg2[%c0, %c0_1] : memref<8x32xf32, #tpu.memory_space<vmem>>, vector<8x32xf32>
    %c0_2 = arith.constant 0 : index
    %c0_3 = arith.constant 0 : index
    %4 = vector.load %arg3[%c0_2, %c0_3] : memref<8x32xf32, #tpu.memory_space<vmem>>, vector<8x32xf32>
    %c0_4 = arith.constant 0 : index
    %c0_5 = arith.constant 0 : index
    %5 = vector.load %arg4[%c0_4, %c0_5] : memref<8x1xf32, #tpu.memory_space<vmem>>, vector<8x1xf32>
    %6 = arith.mulf %3, %4 : vector<8x32xf32>
    %cst = arith.constant dense<0.000000e+00> : vector<8xf32>
    %7 = vector.multi_reduction <add>, %6, %cst [1] : vector<8x32xf32> to vector<8xf32>
    %8 = vector.shape_cast %7 : vector<8xf32> to vector<8x1xf32>
    %9 = arith.mulf %3, %3 : vector<8x32xf32>
    %cst_6 = arith.constant dense<0.000000e+00> : vector<8xf32>
    %10 = vector.multi_reduction <add>, %9, %cst_6 [1] : vector<8x32xf32> to vector<8xf32>
    %11 = vector.shape_cast %10 : vector<8xf32> to vector<8x1xf32>
    %12 = arith.mulf %4, %4 : vector<8x32xf32>
    %cst_7 = arith.constant dense<0.000000e+00> : vector<8xf32>
    %13 = vector.multi_reduction <add>, %12, %cst_7 [1] : vector<8x32xf32> to vector<8xf32>
    %14 = vector.shape_cast %13 : vector<8xf32> to vector<8x1xf32>
    %cst_8 = arith.constant 1.000000e-16 : f32
    %15 = vector.broadcast %cst_8 : f32 to vector<8x1xf32>
    %16 = arith.maximumf %11, %15 : vector<8x1xf32>
    %17 = math.rsqrt %16 : vector<8x1xf32>
    %cst_9 = arith.constant 1.000000e-16 : f32
    %18 = vector.broadcast %cst_9 : f32 to vector<8x1xf32>
    %19 = arith.maximumf %14, %18 : vector<8x1xf32>
    %20 = math.rsqrt %19 : vector<8x1xf32>
    %21 = arith.mulf %8, %17 : vector<8x1xf32>
    %22 = arith.mulf %21, %20 : vector<8x1xf32>
    %cst_10 = arith.constant 1.000000e+00 : f32
    %23 = vector.broadcast %cst_10 : f32 to vector<8x1xf32>
    %24 = arith.subf %23, %22 : vector<8x1xf32>
    %25 = arith.mulf %24, %24 : vector<8x1xf32>
    %cst_11 = arith.constant 2.500000e-01 : f32
    %26 = vector.broadcast %cst_11 : f32 to vector<8x1xf32>
    %27 = arith.mulf %26, %25 : vector<8x1xf32>
    %cst_12 = arith.constant 0.000000e+00 : f32
    %28 = vector.broadcast %cst_12 : f32 to vector<8x1xf32>
    %29 = arith.cmpf olt, %22, %28 : vector<8x1xf32>
    %30 = arith.mulf %22, %22 : vector<8x1xf32>
    %cst_13 = arith.constant 0.000000e+00 : f32
    %31 = vector.broadcast %cst_13 : f32 to vector<8x1xf32>
    %32 = arith.select %29, %30, %31 : vector<8x1xi1>, vector<8x1xf32>
    %33 = arith.subf %32, %27 : vector<8x1xf32>
    %34 = arith.mulf %5, %33 : vector<8x1xf32>
    %35 = arith.addf %27, %34 : vector<8x1xf32>
    %c1_i32 = arith.constant 1 : i32
    %36 = arith.muli %arg0, %c1_i32 : i32
    %37 = arith.addi %36, %arg1 : i32
    %c8_i32 = arith.constant 8 : i32
    %38 = arith.muli %37, %c8_i32 : i32
    %c8_i32_14 = arith.constant 8 : i32
    %39 = arith.addi %38, %c8_i32_14 : i32
    %c8_i32_15 = arith.constant 8 : i32
    %40 = arith.cmpi sgt, %39, %c8_i32_15 : i32
    %41 = arith.extui %40 : i1 to i32
    %c0_i32_16 = arith.constant 0 : i32
    %42 = arith.cmpi ne, %41, %c0_i32_16 : i32
    scf.if %42 {
      %46 = tpu.iota {dimensions = array<i32: 0>} : vector<8x1xi32>
      %47 = vector.broadcast %38 : i32 to vector<8x1xi32>
      %48 = arith.addi %47, %46 : vector<8x1xi32>
      %c8_i32_18 = arith.constant 8 : i32
      %49 = vector.broadcast %c8_i32_18 : i32 to vector<8x1xi32>
      %50 = arith.cmpi slt, %48, %49 : vector<8x1xi32>
      %cst_19 = arith.constant 0.000000e+00 : f32
      %51 = vector.broadcast %cst_19 : f32 to vector<8x1xf32>
      %52 = arith.select %50, %35, %51 : vector<8x1xi1>, vector<8x1xf32>
      %c0_20 = arith.constant 0 : index
      %c0_21 = arith.constant 0 : index
      %53 = vector.load %arg5[%c0_20, %c0_21] : memref<8x128xf32, #tpu.memory_space<vmem>>, vector<8x128xf32>
      %54 = vector.shape_cast %52 : vector<8x1xf32> to vector<1x8x1xf32>
      %cst_22 = arith.constant dense<0.000000e+00> : vector<1xf32>
      %55 = vector.multi_reduction <add>, %54, %cst_22 [1, 2] : vector<1x8x1xf32> to vector<1xf32>
      %56 = vector.shape_cast %55 : vector<1xf32> to vector<1x1x1xf32>
      %57 = vector.extract %56[0, 0, 0] : f32 from vector<1x1x1xf32>
      %58 = vector.broadcast %57 : f32 to vector<8x128xf32>
      %59 = arith.addf %53, %58 : vector<8x128xf32>
      %c0_23 = arith.constant 0 : index
      %c0_24 = arith.constant 0 : index
      %60 = vector.load %arg5[%c0_23, %c0_24] : memref<8x128xf32, #tpu.memory_space<vmem>>, vector<8x128xf32>
      tpu.vector_store %arg5[%c0_23, %c0_24], %59 {strides = array<i32>} : memref<8x128xf32, #tpu.memory_space<vmem>>, vector<8x128xf32>,
    } else {
    }
    %true = arith.constant true
    %43 = arith.xori %40, %true : i1
    %44 = arith.extui %43 : i1 to i32
    %c0_i32_17 = arith.constant 0 : i32
    %45 = arith.cmpi ne, %44, %c0_i32_17 : i32
    scf.if %45 {
      %c0_18 = arith.constant 0 : index
      %c0_19 = arith.constant 0 : index
      %46 = vector.load %arg5[%c0_18, %c0_19] : memref<8x128xf32, #tpu.memory_space<vmem>>, vector<8x128xf32>
      %47 = vector.shape_cast %35 : vector<8x1xf32> to vector<1x8x1xf32>
      %cst_20 = arith.constant dense<0.000000e+00> : vector<1xf32>
      %48 = vector.multi_reduction <add>, %47, %cst_20 [1, 2] : vector<1x8x1xf32> to vector<1xf32>
      %49 = vector.shape_cast %48 : vector<1xf32> to vector<1x1x1xf32>
      %50 = vector.extract %49[0, 0, 0] : f32 from vector<1x1x1xf32>
      %51 = vector.broadcast %50 : f32 to vector<8x128xf32>
      %52 = arith.addf %46, %51 : vector<8x128xf32>
      %c0_21 = arith.constant 0 : index
      %c0_22 = arith.constant 0 : index
      %53 = vector.load %arg5[%c0_21, %c0_22] : memref<8x128xf32, #tpu.memory_space<vmem>>, vector<8x128xf32>
      tpu.vector_store %arg5[%c0_21, %c0_22], %52 {strides = array<i32>} : memref<8x128xf32, #tpu.memory_space<vmem>>, vector<8x128xf32>,
    } else {
    }
    return
  }
  func.func @transform_0(%arg0: i32, %arg1: i32) -> (i32, i32) {
    %c1_i32 = arith.constant 1 : i32
    %0 = arith.muli %arg0, %c1_i32 : i32
    %1 = arith.addi %0, %arg1 : i32
    %c0_i32 = arith.constant 0 : i32
    %2 = arith.minsi %1, %c0_i32 : i32
    %c0_i32_0 = arith.constant 0 : i32
    %c0_i32_1 = arith.constant 0 : i32
    return %2, %c0_i32_0 : i32, i32
  }
  func.func @transform_1(%arg0: i32, %arg1: i32) -> (i32, i32) {
    %c1_i32 = arith.constant 1 : i32
    %0 = arith.muli %arg0, %c1_i32 : i32
    %1 = arith.addi %0, %arg1 : i32
    %c0_i32 = arith.constant 0 : i32
    %2 = arith.minsi %1, %c0_i32 : i32
    %c0_i32_0 = arith.constant 0 : i32
    %c0_i32_1 = arith.constant 0 : i32
    return %2, %c0_i32_0 : i32, i32
  }
  func.func @transform_2(%arg0: i32, %arg1: i32) -> (i32, i32) {
    %c1_i32 = arith.constant 1 : i32
    %0 = arith.muli %arg0, %c1_i32 : i32
    %1 = arith.addi %0, %arg1 : i32
    %c0_i32 = arith.constant 0 : i32
    %2 = arith.minsi %1, %c0_i32 : i32
    %c0_i32_0 = arith.constant 0 : i32
    %c0_i32_1 = arith.constant 0 : i32
    return %2, %c0_i32_0 : i32, i32
  }
  func.func @transform_3(%arg0: i32, %arg1: i32) -> (i32, i32) {
    %c0_i32 = arith.constant 0 : i32
    %c0_i32_0 = arith.constant 0 : i32
    return %arg0, %c0_i32 : i32, i32
  }
}

</mosaic_0001>

<llo_original>
// kernel: tpu_custom_call.1
$region0: #{tpu_custom_call.1}
  #allocation0 [shape = 'u32[]', space=smem, size = 0x4, offset = 0x4, fixed_abs, tag = 'smem constant byte address 0x4 - core index']
  #allocation1 [shape = 'u32[72,128]{1,0:T(1,128)}', space=vmem, size = 0x9000, scoped, tag = 'internal scratch']
  %s0 = inlined_call_operand.vmem [shape: f32[8,32], index: 0, kind: input, shape index: {}]
  %s1 = inlined_call_operand.hbm [shape: f32[8,32], index: 1, kind: input, shape index: {}]
  %s2 = inlined_call_operand.vmem [shape: f32[8,1], index: 2, kind: input, shape index: {}]
  %s3 = inlined_call_operand.hbm [shape: f32[16,128], index: 3, kind: output, shape index: {}]
  %s4 = sld [smem:[#allocation0]]
  $region61: #{tpu_custom_call.1} parent=0
    _
  %s6 = ssub.s32 1, %s4
  %s7 = scalar_select 0, %s6, %s4
  $region1: #{tpu_custom_call.1} parent=0
    #allocation2 [shape = 'u8[8192]{0}', space=vmem, size = 0x2000, scoped, tag = 'input window, operand 1']
    #allocation3 [shape = 's32[2]{0}', space=sflag, size = 0x8, scoped, tag = 'scoped memory for tpu_custom_call.1']
    #allocation4 [shape = 's32[2]{0}', space=sflag, size = 0x8, scoped, tag = 'scoped memory for tpu_custom_call.1']
    #allocation5 [shape = 'u8[8192]{0}', space=vmem, size = 0x2000, scoped, tag = 'output window, operand 0']
    %8 = vsyncpa [#allocation3], 0
    %s9 = scalar_lea.sflag [#allocation3], 1
    %10 = vsyncpa %s9, 0
    %11 = vsyncpa [#allocation4], 0
    %s12 = scalar_lea.sflag [#allocation4], 1
    %13 = vsyncpa %s12, 0
    loop: start=0, step=1, limit=4
    $region2: #{tpu_custom_call.1} parent=1 // loop_pre_header
      _
    $region3: #{tpu_custom_call.1} parent=1 // loop_header
      %s15 = sphi 0, %s19
      %p16 = scmp.ge.s32.totalorder %s15, 4
      %s22 = sphi 0, %s34
      %s23 = sphi 0, %s30
      %s24 = sphi 0, %s22
      %s25 = sphi 0, %s23
      %s26 = sphi 0, %s24
      %s27 = sphi 0, %s25
      %s43 = sphi 0, %s45
      %s46 = sphi 0, %s43
      %s47 = sphi 0, %s46
      %s63 = sphi 0, %s47
      %s75 = sphi 0, %s77
      %s78 = sphi 0, %s75
      %s79 = sphi 0, %s78
      %s95 = sphi 0, %s79
      %s107 = sphi 0, %s109
      %s110 = sphi 0, %s107
      %s111 = sphi 0, %s110
      %s127 = sphi 0, %s111
      %s133 = sphi 0, %s135
      %s136 = sphi 0, %s133
      %s137 = sphi 0, %s136
      %s153 = sphi 0, %s137
    $region4: #{tpu_custom_call.1} parent=1 // loop_header_branch
      %18 = sbr.rel (%p16) target = $region8
    $region5: #{tpu_custom_call.1} parent=1 // loop_body
      %s20 = ssub.s32 %s15, 1
      %s21 = ssub.s32 %s15, 2
      %s28 = sadd.s32 1, %s23
      %p29 = scmp.ge.s32.totalorder %s28, 1
      %s30 = scalar_select %p29, 0, %s28
      %s31 = sadd.s32 1, %s22
      %s32 = scalar_select %p29, %s31, %s22
      %p33 = scmp.ge.s32.totalorder %s32, 2
      %s34 = scalar_select %p33, 0, %s32
      %s35 = sadd.s32 %s22, %s23
      %p36 = scmp.lt.s32.totalorder %s35, 0
      %s37 = scalar_select %p36, %s35, 0
      %s38 = sadd.s32 %s34, %s30
      %p39 = scmp.lt.s32.totalorder %s38, 0
      %s40 = scalar_select %p39, %s38, 0
      %s41 = ssub.s32 %s37, %s40
      %p42 = scmp.eq.s32.totalorder %s41, 0
      %s44 = sadd.s32 %s43, 1
      %s45 = scalar_select %p42, %s43, %s44
      %p48 = pneg %p42
      %p49 = scmp.eq.s32.totalorder %s15, 1
      %p50 = por %p48, %p49
      %p51 = scmp.ne.s32.totalorder %s43, %s46
      %p52 = scmp.eq.s32.totalorder %s15, 0
      %p53 = por %p51, %p52
      %p54 = scmp.ne.s32.totalorder %s43, %s46
      %p55 = scmp.eq.s32.totalorder %s20, 1
      %p56 = por %p54, %p55
      %p57 = scmp.ne.s32.totalorder %s46, %s47
      %p58 = scmp.eq.s32.totalorder %s20, 0
      %p59 = por %p57, %p58
      %p60 = scmp.ne.s32.totalorder %s46, %s47
      %p61 = scmp.eq.s32.totalorder %s21, 1
      %p62 = por %p60, %p61
      %p64 = scmp.ne.s32.totalorder %s47, %s63
      %p65 = scmp.eq.s32.totalorder %s21, 0
      %p66 = por %p64, %p65
      %s67 = sadd.s32 %s22, %s23
      %p68 = scmp.lt.s32.totalorder %s67, 0
      %s69 = scalar_select %p68, %s67, 0
      %s70 = sadd.s32 %s34, %s30
      %p71 = scmp.lt.s32.totalorder %s70, 0
      %s72 = scalar_select %p71, %s70, 0
      %s73 = ssub.s32 %s69, %s72
      %p74 = scmp.eq.s32.totalorder %s73, 0
      %s76 = sadd.s32 %s75, 1
      %s77 = scalar_select %p74, %s75, %s76
      %p80 = pneg %p74
      %p81 = scmp.eq.s32.totalorder %s15, 1
      %p82 = por %p80, %p81
      %p83 = scmp.ne.s32.totalorder %s75, %s78
      %p84 = scmp.eq.s32.totalorder %s15, 0
      %p85 = por %p83, %p84
      %p86 = scmp.ne.s32.totalorder %s75, %s78
      %p87 = scmp.eq.s32.totalorder %s20, 1
      %p88 = por %p86, %p87
      %p89 = scmp.ne.s32.totalorder %s78, %s79
      %p90 = scmp.eq.s32.totalorder %s20, 0
      %p91 = por %p89, %p90
      %p92 = scmp.ne.s32.totalorder %s78, %s79
      %p93 = scmp.eq.s32.totalorder %s21, 1
      %p94 = por %p92, %p93
      %p96 = scmp.ne.s32.totalorder %s79, %s95
      %p97 = scmp.eq.s32.totalorder %s21, 0
      %p98 = por %p96, %p97
      %s99 = sadd.s32 %s22, %s23
      %p100 = scmp.lt.s32.totalorder %s99, 0
      %s101 = scalar_select %p100, %s99, 0
      %s102 = sadd.s32 %s34, %s30
      %p103 = scmp.lt.s32.totalorder %s102, 0
      %s104 = scalar_select %p103, %s102, 0
      %s105 = ssub.s32 %s101, %s104
      %p106 = scmp.eq.s32.totalorder %s105, 0
      %s108 = sadd.s32 %s107, 1
      %s109 = scalar_select %p106, %s107, %s108
      %p112 = pneg %p106
      %p113 = scmp.eq.s32.totalorder %s15, 1
      %p114 = por %p112, %p113
      %p115 = scmp.ne.s32.totalorder %s107, %s110
      %p116 = scmp.eq.s32.totalorder %s15, 0
      %p117 = por %p115, %p116
      %p118 = scmp.ne.s32.totalorder %s107, %s110
      %p119 = scmp.eq.s32.totalorder %s20, 1
      %p120 = por %p118, %p119
      %p121 = scmp.ne.s32.totalorder %s110, %s111
      %p122 = scmp.eq.s32.totalorder %s20, 0
      %p123 = por %p121, %p122
      %p124 = scmp.ne.s32.totalorder %s110, %s111
      %p125 = scmp.eq.s32.totalorder %s21, 1
      %p126 = por %p124, %p125
      %p128 = scmp.ne.s32.totalorder %s111, %s127
      %p129 = scmp.eq.s32.totalorder %s21, 0
      %p130 = por %p128, %p129
      %s131 = ssub.s32 %s22, %s34
      %p132 = scmp.eq.s32.totalorder %s131, 0
      %s134 = sadd.s32 %s133, 1
      %s135 = scalar_select %p132, %s133, %s134
      %p138 = pneg %p132
      %p139 = scmp.eq.s32.totalorder %s15, 1
      %p140 = por %p138, %p139
      %p141 = scmp.ne.s32.totalorder %s133, %s136
      %p142 = scmp.eq.s32.totalorder %s15, 0
      %p143 = por %p141, %p142
      %p144 = scmp.ne.s32.totalorder %s133, %s136
      %p145 = scmp.eq.s32.totalorder %s20, 1
      %p146 = por %p144, %p145
      %p147 = scmp.ne.s32.totalorder %s136, %s137
      %p148 = scmp.eq.s32.totalorder %s20, 0
      %p149 = por %p147, %p148
      %p150 = scmp.ne.s32.totalorder %s136, %s137
      %p151 = scmp.eq.s32.totalorder %s21, 1
      %p152 = por %p150, %p151
      %p154 = scmp.ne.s32.totalorder %s137, %s153
      %p155 = scmp.eq.s32.totalorder %s21, 0
      %p156 = por %p154, %p155
      %p157 = scmp.le.s32.totalorder 1, %s15
      %p158 = scmp.lt.s32.totalorder %s15, 3
      %p159 = pnand %p157, %p158
      %p160 = pneg %p159
      // Predicated region
      $region9: #{tpu_custom_call.1} parent=5 // pred_check
        _
      $region10: #{tpu_custom_call.1} parent=5 // pred_check_branch
        %162 = sbr.rel (%p159) target = $region12
      $region11: #{tpu_custom_call.1} parent=5 // pred_region
        %s163 = ssub.s32 %s15, 1
      $region12: #{tpu_custom_call.1} parent=5 // pred_fallthru
        _
      %p164 = scmp.lt.s32.totalorder %s15, 2
      // Predicated region
      $region13: #{tpu_custom_call.1} parent=5 // pred_check
        %p165 = pneg %p164
      $region14: #{tpu_custom_call.1} parent=5 // pred_check_branch
        %167 = sbr.rel (%p165) target = $region16
      $region15: #{tpu_custom_call.1} parent=5 // pred_region
        // Predicated region
        $region17: #{tpu_custom_call.1} parent=15 // pred_check
          %p168 = pneg %p53
        $region18: #{tpu_custom_call.1} parent=15 // pred_check_branch
          %170 = sbr.rel (%p168) target = $region20
        $region19: #{tpu_custom_call.1} parent=15 // pred_region
          %s171 = sadd.s32 %s22, %s23
          %p172 = scmp.lt.s32.totalorder %s171, 0
          %s173 = scalar_select %p172, %s171, 0
          %p174 = scmp.lt.s32.totalorder %s173, 0
          %s175 = scalar_select %p174, %s173, 0
          %s176 = smul.addr %s175, 8
          %s177 = scalar_lea.vmem %s0, %s176
          %s178 = sadd.s32 %s22, %s23
          %p179 = scmp.lt.s32.totalorder %s178, 0
          %s180 = scalar_select %p179, %s178, 0
        $region20: #{tpu_custom_call.1} parent=15 // pred_fallthru
          _
        // Predicated region
        $region21: #{tpu_custom_call.1} parent=15 // pred_check
          %p181 = pneg %p85
        $region22: #{tpu_custom_call.1} parent=15 // pred_check_branch
          %183 = sbr.rel (%p181) target = $region24
        $region23: #{tpu_custom_call.1} parent=15 // pred_region
          %s184 = sand.u32 %s75, 1
          %s185 = scalar_lea.sflag [#allocation3], %s184
          %s186 = sand.u32 %s75, 1
          %s187 = smul.addr %s186, 8
          %s188 = scalar_lea.vmem [#allocation2], %s187
          %s189 = sadd.s32 %s22, %s23
          %p190 = scmp.lt.s32.totalorder %s189, 0
          %s191 = scalar_select %p190, %s189, 0
          %193 = vsyncadd %s185, 0
          %s194 = smul.addr %s191, 8
          %s195 = scalar_lea.hbm %s1, %s194
          %s197 = sshll.u32 %s195, 4
          %s198 = int_to_ptr.hbm [resolvable:$true] %s197
          %s199 = sshll.u32 %s188, 4
          %s200 = int_to_ptr.vmem [resolvable:$true] %s199
          %202 = dma.hbm_to_vmem [thread:$0]  %s198, 128, %s200, %s185
        $region24: #{tpu_custom_call.1} parent=15 // pred_fallthru
          _
        // Predicated region
        $region25: #{tpu_custom_call.1} parent=15 // pred_check
          %p203 = pneg %p117
        $region26: #{tpu_custom_call.1} parent=15 // pred_check_branch
          %205 = sbr.rel (%p203) target = $region28
        $region27: #{tpu_custom_call.1} parent=15 // pred_region
          %s206 = sadd.s32 %s22, %s23
          %p207 = scmp.lt.s32.totalorder %s206, 0
          %s208 = scalar_select %p207, %s206, 0
          %p209 = scmp.lt.s32.totalorder %s208, 0
          %s210 = scalar_select %p209, %s208, 0
          %s211 = smul.addr %s210, 8
          %s212 = scalar_lea.vmem %s2, %s211
          %s213 = sadd.s32 %s22, %s23
          %p214 = scmp.lt.s32.totalorder %s213, 0
          %s215 = scalar_select %p214, %s213, 0
        $region28: #{tpu_custom_call.1} parent=15 // pred_fallthru
          _
      $region16: #{tpu_custom_call.1} parent=5 // pred_fallthru
        _
      %p216 = scmp.le.s32.totalorder 1, %s15
      %p217 = scmp.lt.s32.totalorder %s15, 3
      %p218 = pnand %p216, %p217
      %p219 = pneg %p218
      // Predicated region
      $region29: #{tpu_custom_call.1} parent=5 // pred_check
        _
      $region30: #{tpu_custom_call.1} parent=5 // pred_check_branch
        %221 = sbr.rel (%p218) target = $region32
      $region31: #{tpu_custom_call.1} parent=5 // pred_region
        %s222 = ssub.s32 %s15, 1
        %s223 = sand.u32 %s78, 1
        %s224 = scalar_lea.sflag [#allocation3], %s223
        %s225 = sand.u32 %s78, 1
        %s226 = smul.addr %s225, 8
        %s227 = scalar_lea.vmem [#allocation2], %s226
        // Predicated region
        $region33: #{tpu_custom_call.1} parent=31 // pred_check
          %p228 = pneg %p91
        $region34: #{tpu_custom_call.1} parent=31 // pred_check_branch
          %230 = sbr.rel (%p228) target = $region36
        $region35: #{tpu_custom_call.1} parent=31 // pred_region
          %232 = dma.done %s224, 128
        $region36: #{tpu_custom_call.1} parent=31 // pred_fallthru
          _
        %s233 = sadd.s32 %s24, %s25
        %p234 = scmp.lt.s32.totalorder %s233, 0
        %s235 = scalar_select %p234, %s233, 0
        %p236 = scmp.lt.s32.totalorder %s235, 0
        %s237 = scalar_select %p236, %s235, 0
        %s238 = smul.addr %s237, 8
        %s239 = scalar_lea.vmem %s0, %s238
        %p240 = pneg %p59
        %p241 = pneg %p56
        %s242 = sand.u32 %s78, 1
        %s243 = scalar_lea.sflag [#allocation3], %s242
        %s244 = sand.u32 %s78, 1
        %s245 = smul.addr %s244, 8
        %s246 = scalar_lea.vmem [#allocation2], %s245
        %p247 = pneg %p91
        %p248 = pneg %p88
        %s249 = sadd.s32 %s24, %s25
        %p250 = scmp.lt.s32.totalorder %s249, 0
        %s251 = scalar_select %p250, %s249, 0
        %p252 = scmp.lt.s32.totalorder %s251, 0
        %s253 = scalar_select %p252, %s251, 0
        %s254 = smul.addr %s253, 8
        %s255 = scalar_lea.vmem %s2, %s254
        %p256 = pneg %p123
        %p257 = pneg %p120
        %p258 = pneg %p149
        %p259 = pneg %p146
        %s260 = sand.u32 %s136, 1
        %s261 = scalar_lea.sflag [#allocation4], %s260
        %s262 = sand.u32 %s136, 1
        %s263 = smul.addr %s262, 8
        %s264 = scalar_lea.vmem [#allocation5], %s263
        %s265 = sadd.s32 %s24, %s25
        %p266 = scmp.lt.s32.totalorder %s265, 0
        %s267 = scalar_select %p266, %s265, 0
        %p268 = scmp.lt.s32.totalorder %s267, 0
        %s269 = scalar_select %p268, %s267, 0
        %s270 = smul.addr %s269, 8
        %s271 = scalar_lea.vmem %s0, %s270
        %s272 = sadd.s32 %s24, %s25
        %p273 = scmp.lt.s32.totalorder %s272, 0
        %s274 = scalar_select %p273, %s272, 0
        %s275 = sadd.s32 %s24, %s25
        %p276 = scmp.lt.s32.totalorder %s275, 0
        %s277 = scalar_select %p276, %s275, 0
        %s278 = sadd.s32 %s24, %s25
        %p279 = scmp.lt.s32.totalorder %s278, 0
        %s280 = scalar_select %p279, %s278, 0
        %p281 = scmp.lt.s32.totalorder %s280, 0
        %s282 = scalar_select %p281, %s280, 0
        %s283 = smul.addr %s282, 8
        %s284 = scalar_lea.vmem %s2, %s283
        %s285 = sadd.s32 %s24, %s25
        %p286 = scmp.lt.s32.totalorder %s285, 0
        %s287 = scalar_select %p286, %s285, 0
        %p288 = scmp.eq.s32.totalorder %s25, 0
        // Predicated region
        $region37: #{tpu_custom_call.1} parent=31 // pred_check
          %p289 = pneg %p288
        $region38: #{tpu_custom_call.1} parent=31 // pred_check_branch
          %291 = sbr.rel (%p289) target = $region40
        $region39: #{tpu_custom_call.1} parent=31 // pred_region
          %292 = vst [vmem:[%s264] sm:$0xff] 0.0
        $region40: #{tpu_custom_call.1} parent=31 // pred_fallthru
          _
        %v293 = vld [vmem:[%s271] sm:$0xff]
        %v294 = vld [vmem:[%s227] sm:$0xff]
        %v295 = vld [vmem:[%s284] sm:$0xff]
        %v296 = vmul.f32 %v293, %v294
        %vm297 = vcmask 261120
        %v298 = vsel %vm297, %v296, 0.0
        %299 = vadd.xlane.f32.xlu0 %v298
        %v300 = vpop.xlane.xlu0 %299
        %v301 = vmul.f32 %v293, %v293
        %v302 = vsel %vm297, %v301, 0.0
        %303 = vadd.xlane.f32.xlu0 %v302
        %v304 = vpop.xlane.xlu0 %303
        %v305 = vmul.f32 %v294, %v294
        %v306 = vsel %vm297, %v305, 0.0
        %307 = vadd.xlane.f32.xlu0 %v306
        %v308 = vpop.xlane.xlu0 %307
        %v309 = vmax.f32 %v304, 1e-16
        %v310 = vrsqrt.pop %v309
        %v311 = vmul.f32 %v310, %v309
        %v312 = vmul.f32 %v311, %v310
        %v313 = vmul.f32 0.5, %v312
        %v314 = vsub.f32 1.5, %v313
        %v315 = vmul.f32 %v310, %v314
        %vm316 = vweird.f32 %v309
        %vm317 = vweird.f32 %v310
        %vm318 = vmor %vm316, %vm317
        %v319 = vsel %vm318, %v310, %v315
        %v320 = vmax.f32 %v308, 1e-16
        %v321 = vrsqrt.pop %v320
        %v322 = vmul.f32 %v321, %v320
        %v323 = vmul.f32 %v322, %v321
        %v324 = vmul.f32 0.5, %v323
        %v325 = vsub.f32 1.5, %v324
        %v326 = vmul.f32 %v321, %v325
        %vm327 = vweird.f32 %v320
        %vm328 = vweird.f32 %v321
        %vm329 = vmor %vm327, %vm328
        %v330 = vsel %vm329, %v321, %v326
        %v331 = vmul.f32 %v300, %v319
        %v332 = vmul.f32 %v331, %v330
        %v333 = vsub.f32 1.0, %v332
        %v334 = vmul.f32 %v333, %v333
        %v335 = vmul.f32 %v334, 0.25
        %vm336 = vcmp.lt.f32.partialorder %v332, 0.0
        %v337 = vmul.f32 %v332, %v332
        %v338 = vsel %vm336, %v337, 0.0
        %v339 = vsub.f32 %v338, %v335
        %v340 = vmul.f32 %v295, %v339
        %v341 = vadd.f32 %v335, %v340
        %s342 = sadd.s32 %s24, %s25
        %s343 = smul.u32 %s342, 8
        %s344 = sadd.s32 %s343, 8
        %p345 = scmp.gt.s32.totalorder %s344, 8
        // Predicated region
        $region41: #{tpu_custom_call.1} parent=31 // pred_check
          %p346 = pneg %p345
        $region42: #{tpu_custom_call.1} parent=31 // pred_check_branch
          %348 = sbr.rel (%p346) target = $region44
        $region43: #{tpu_custom_call.1} parent=31 // pred_region
          %v349 = vlaneseq
          %v350 = vshrl.u32 %v349, 7
          %v351 = vstv %s343
          %v352 = vadd.s32 %v351, %v350
          %vm353 = vcmp.lt.s32.totalorder %v352, 8
          %v354 = vsel %vm353, %v341, 0.0
          %v355 = vld [vmem:[%s264] sm:$0xff]
          %vm356 = vcmask 7168
          %v357 = vsel %vm356, %v354, 0.0
          %358 = vadd.xlane.f32.xlu0 %v357
          %v359 = vpop.xlane.xlu0 %358
          %v360 = vrot.slane %v359, 4
          %v361 = vadd.f32 %v359, %v360
          %v362 = vrot.slane %v361, 2
          %v363 = vadd.f32 %v361, %v362
          %v364 = vrot.slane %v363, 1
          %v365 = vadd.f32 %v363, %v364
          %s366 = vtos %v365
          %v367 = vstv %s366
          %v368 = vadd.f32 %v355, %v367
          %369 = vst [vmem:[%s264] sm:$0xff] %v368
        $region44: #{tpu_custom_call.1} parent=31 // pred_fallthru
          _
        %p370 = scmp.le.s32.totalorder %s344, 8
        // Predicated region
        $region45: #{tpu_custom_call.1} parent=31 // pred_check
          %p371 = pneg %p370
        $region46: #{tpu_custom_call.1} parent=31 // pred_check_branch
          %373 = sbr.rel (%p371) target = $region48
        $region47: #{tpu_custom_call.1} parent=31 // pred_region
          %v374 = vld [vmem:[%s264] sm:$0xff]
          %vm375 = vcmask 7168
          %v376 = vsel %vm375, %v341, 0.0
          %377 = vadd.xlane.f32.xlu0 %v376
          %v378 = vpop.xlane.xlu0 %377
          %v379 = vrot.slane %v378, 4
          %v380 = vadd.f32 %v378, %v379
          %v381 = vrot.slane %v380, 2
          %v382 = vadd.f32 %v380, %v381
          %v383 = vrot.slane %v382, 1
          %v384 = vadd.f32 %v382, %v383
          %s385 = vtos %v384
          %v386 = vstv %s385
          %v387 = vadd.f32 %v374, %v386
          %388 = vst [vmem:[%s264] sm:$0xff] %v387
        $region48: #{tpu_custom_call.1} parent=31 // pred_fallthru
          _
        %s389 = sand.u32 %s136, 1
        %s390 = scalar_lea.sflag [#allocation4], %s389
        %s391 = sand.u32 %s136, 1
        %s392 = smul.addr %s391, 8
        %s393 = scalar_lea.vmem [#allocation5], %s392
        // Predicated region
        $region49: #{tpu_custom_call.1} parent=31 // pred_check
          %p394 = pneg %p146
        $region50: #{tpu_custom_call.1} parent=31 // pred_check_branch
          %396 = sbr.rel (%p394) target = $region52
        $region51: #{tpu_custom_call.1} parent=31 // pred_region
          %398 = vsyncadd %s390, 0
          %s399 = smul.addr %s24, 8
          %s400 = scalar_lea.hbm %s3, %s399
          %s402 = sshll.u32 %s393, 4
          %s403 = int_to_ptr.vmem [resolvable:$true] %s402
          %s404 = sshll.u32 %s400, 4
          %s405 = int_to_ptr.hbm [resolvable:$true] %s404
          %407 = dma.vmem_to_hbm [thread:$0]  %s403, 128, %s405, %s390
        $region52: #{tpu_custom_call.1} parent=31 // pred_fallthru
          _
      $region32: #{tpu_custom_call.1} parent=5 // pred_fallthru
        _
      %p408 = scmp.le.s32.totalorder 2, %s15
      // Predicated region
      $region53: #{tpu_custom_call.1} parent=5 // pred_check
        %p409 = pneg %p408
      $region54: #{tpu_custom_call.1} parent=5 // pred_check_branch
        %411 = sbr.rel (%p409) target = $region56
      $region55: #{tpu_custom_call.1} parent=5 // pred_region
        %s412 = ssub.s32 %s15, 2
        // Predicated region
        $region57: #{tpu_custom_call.1} parent=55 // pred_check
          %p413 = pneg %p152
        $region58: #{tpu_custom_call.1} parent=55 // pred_check_branch
          %415 = sbr.rel (%p413) target = $region60
        $region59: #{tpu_custom_call.1} parent=55 // pred_region
          %s416 = sand.u32 %s137, 1
          %s417 = scalar_lea.sflag [#allocation4], %s416
          %s418 = sand.u32 %s137, 1
          %s419 = smul.addr %s418, 8
          %s420 = scalar_lea.vmem [#allocation5], %s419
          %422 = dma.done %s417, 128
        $region60: #{tpu_custom_call.1} parent=55 // pred_fallthru
          _
      $region56: #{tpu_custom_call.1} parent=5 // pred_fallthru
        _
    $region6: #{tpu_custom_call.1} parent=1 // loop_footer
      %s19 = sadd.s32 1, %s15
    $region7: #{tpu_custom_call.1} parent=1 // loop_footer_branch
      %14 = sbr.rel target = $region3
    $region8: #{tpu_custom_call.1} parent=1 // loop_exit
      _
    %423 = vsyncpa [#allocation3], 1
    %s424 = scalar_lea.sflag [#allocation3], 1
    %425 = vsyncpa %s424, 1
    %426 = vsyncpa [#allocation4], 1
    %s427 = scalar_lea.sflag [#allocation4], 1
    %428 = vsyncpa %s427, 1

</llo_original>
